<compile_context>
chip_gen: v7x
topology: tpu7x:2x2x1
jax: 0.10.0
libtpu: 0.0.40
codegen_flags: <defaults>
</compile_context>

<pallas_src>
import functools

import jax
import jax.numpy as jnp
from jax.experimental import pallas as pl
from jax.experimental.pallas import tpu as pltpu

EPS = 1e-5
NEG_SLOPE = 0.2
LANE = 128


def _round_up(n, m):
    return ((n + m - 1) // m) * m


def _pad_to(a, shape):
    pads = [(0, t - s) for s, t in zip(a.shape, shape)]
    return jnp.pad(a, pads)


def _fused_encoder_kernel(x_ref,
                          w1_ref, g1_ref, be1_ref,
                          w2_ref, g2_ref, be2_ref,
                          w3_ref, b3_ref,
                          emb_ref, xbn_ref):
    """One encoder branch per grid step (grid axis 0 = modality)."""
    x = x_ref[...]                                          # (B, Din_pad) f32

    # ---- input BatchNorm1d (affine=False), folded to scale/shift ----
    m0 = jnp.mean(x, axis=0, keepdims=True)                 # XLU sublane-reduce
    v0 = jnp.mean((x - m0) ** 2, axis=0, keepdims=True)
    s0 = jax.lax.rsqrt(v0 + EPS)                            # EUP
    x_bn = x * s0 + (-m0 * s0)                              # fused mul+add
    xbn_ref[...] = x_bn.astype(xbn_ref.dtype)

    def bn_lrelu(h, gamma, beta):
        m = jnp.mean(h, axis=0, keepdims=True)
        v = jnp.mean((h - m) ** 2, axis=0, keepdims=True)
        scale = gamma * jax.lax.rsqrt(v + EPS)
        shift = beta - m * scale
        h = h * scale + shift
        # LeakyReLU(0.2): slope < 1  =>  max(h, 0.2*h) == leaky_relu(h)
        return jnp.maximum(h, NEG_SLOPE * h)

    # ---- Linear -> BN -> LeakyReLU  (bias dropped: cancels inside BN) ----
    h1 = jnp.dot(x_bn, w1_ref[...], preferred_element_type=jnp.float32)
    h1 = bn_lrelu(h1, g1_ref[...], be1_ref[...])

    # ---- Linear -> BN -> LeakyReLU  (bias dropped: cancels inside BN) ----
    h2 = jnp.dot(h1, w2_ref[...], preferred_element_type=jnp.float32)
    h2 = bn_lrelu(h2, g2_ref[...], be2_ref[...])

    # ---- final Linear (bias kept: no BN follows) ----
    emb = jnp.dot(h2, w3_ref[...], preferred_element_type=jnp.float32) + b3_ref[...]
    emb_ref[...] = emb.astype(emb_ref.dtype)


def _pack_params(rna_p, atac_p, in_pad, hid_pad, out_pad):
    """Zero-pad both parameter sets to common lane-aligned shapes and stack
    them along a new leading modality axis of size 2.  b1/b2 are intentionally
    omitted (they cancel inside the following BatchNorm)."""
    shapes = {
        "w1": (in_pad, hid_pad),
        "g1": (1, hid_pad), "be1": (1, hid_pad),
        "w2": (hid_pad, hid_pad),
        "g2": (1, hid_pad), "be2": (1, hid_pad),
        "w3": (hid_pad, out_pad), "b3": (1, out_pad),
    }
    return {k: jnp.stack([_pad_to(rna_p[k], s), _pad_to(atac_p[k], s)])
            for k, s in shapes.items()}


@functools.partial(jax.jit, static_argnames=("out_dim",))
def bn_common_encoder_forward(rna_data, atac_data, rna_params, atac_params, out_dim):
    batch, rna_in = rna_data.shape
    _, atac_in = atac_data.shape
    hidden = rna_params["w1"].shape[1]

    in_pad = _round_up(max(rna_in, atac_in), LANE)
    hid_pad = _round_up(hidden, LANE)
    out_pad = _round_up(out_dim, LANE)

    # stack both modalities: (2, B, in_pad); padded feature columns are zero
    x = jnp.stack([_pad_to(rna_data, (batch, in_pad)),
                   _pad_to(atac_data, (batch, in_pad))])
    p = _pack_params(rna_params, atac_params, in_pad, hid_pad, out_pad)

    im = lambda i: (i, 0, 0)
    in_specs = [
        pl.BlockSpec((None, batch, in_pad), im),        # x
        pl.BlockSpec((None, in_pad, hid_pad), im),      # w1
        pl.BlockSpec((None, 1, hid_pad), im),           # g1
        pl.BlockSpec((None, 1, hid_pad), im),           # be1
        pl.BlockSpec((None, hid_pad, hid_pad), im),     # w2
        pl.BlockSpec((None, 1, hid_pad), im),           # g2
        pl.BlockSpec((None, 1, hid_pad), im),           # be2
        pl.BlockSpec((None, hid_pad, out_pad), im),     # w3
        pl.BlockSpec((None, 1, out_pad), im),           # b3
    ]
    out_specs = (
        pl.BlockSpec((None, batch, out_pad), im),       # emb
        pl.BlockSpec((None, batch, in_pad), im),        # x_bn
    )

    emb, xbn = pl.pallas_call(
        _fused_encoder_kernel,
        grid=(2,),                                      # one program per modality
        in_specs=in_specs,
        out_specs=out_specs,
        out_shape=(
            jax.ShapeDtypeStruct((2, batch, out_pad), jnp.float32),
            jax.ShapeDtypeStruct((2, batch, in_pad), jnp.float32),
        ),
        compiler_params=pltpu.CompilerParams(
            dimension_semantics=("parallel",),          # shard modalities across TCs (v7x)
            vmem_limit_bytes=32 * 1024 * 1024,          # raise for large hidden/input dims
        ),
    )(x, p["w1"], p["g1"], p["be1"],
      p["w2"], p["g2"], p["be2"],
      p["w3"], p["b3"])

    # slice padded lanes back off
    rna_emb = emb[0, :, :out_dim]
    atac_emb = emb[1, :, :out_dim]
    rna_bn = xbn[0, :, :rna_in]
    atac_bn = xbn[1, :, :atac_in]
    return rna_emb, atac_emb, rna_bn, atac_bn


def init_encoder_params(key, in_dim, hidden_dim, out_dim):
    """PyTorch-style init: Linear ~ U(-1/sqrt(fan_in), +); BN gamma=1, beta=0."""
    ks = jax.random.split(key, 6)

    def lin(kw, kb, fi, fo):
        bound = 1.0 / jnp.sqrt(fi)
        w = jax.random.uniform(kw, (fi, fo), jnp.float32, -bound, bound)
        b = jax.random.uniform(kb, (1, fo), jnp.float32, -bound, bound)
        return w, b

    w1, b1 = lin(ks[0], ks[1], in_dim, hidden_dim)
    w2, b2 = lin(ks[2], ks[3], hidden_dim, hidden_dim)
    w3, b3 = lin(ks[4], ks[5], hidden_dim, out_dim)
    return {
        "w1": w1, "b1": b1,
        "g1": jnp.ones((1, hidden_dim), jnp.float32),
        "be1": jnp.zeros((1, hidden_dim), jnp.float32),
        "w2": w2, "b2": b2,
        "g2": jnp.ones((1, hidden_dim), jnp.float32),
        "be2": jnp.zeros((1, hidden_dim), jnp.float32),
        "w3": w3, "b3": b3,
    }


# ---------------- pure-JAX reference for verification ----------------
def _ref_encoder(x, p):
    """Full reference WITH all biases (proves the bias-cancellation in the
    kernel is numerically equivalent)."""
    def bn(h, g=None, b=None):
        m = h.mean(0, keepdims=True)
        v = ((h - m) ** 2).mean(0, keepdims=True)
        h = (h - m) / jnp.sqrt(v + EPS)
        if g is not None:
            h = h * g + b
        return h

    def lrelu(h):
        return jnp.where(h > 0, h, NEG_SLOPE * h)

    x_bn = bn(x)
    h = lrelu(bn(x_bn @ p["w1"] + p["b1"], p["g1"], p["be1"]))
    h = lrelu(bn(h @ p["w2"] + p["b2"], p["g2"], p["be2"]))
    return h @ p["w3"] + p["b3"], x_bn


if __name__ == "__main__":
    batch = 8
    rna_input_size = 16
    atac_input_size = 24
    hidden_dim = 32
    out_dim = 8

    key = jax.random.PRNGKey(0)
    k_rna_x, k_atac_x, k_rna_p, k_atac_p = jax.random.split(key, 4)

    rna_data = jax.random.normal(k_rna_x, (batch, rna_input_size), jnp.float32)
    atac_data = jax.random.normal(k_atac_x, (batch, atac_input_size), jnp.float32)

    rna_params = init_encoder_params(k_rna_p, rna_input_size, hidden_dim, out_dim)
    atac_params = init_encoder_params(k_atac_p, atac_input_size, hidden_dim, out_dim)

    rna_emb, atac_emb, rna_bn, atac_bn = bn_common_encoder_forward(
        rna_data, atac_data, rna_params, atac_params, out_dim)
    jax.block_until_ready((rna_emb, atac_emb, rna_bn, atac_bn))

    # verify against pure-JAX reference (which includes the Linear biases)
    ref_rna_emb, ref_rna_bn = _ref_encoder(rna_data, rna_params)
    ref_atac_emb, ref_atac_bn = _ref_encoder(atac_data, atac_params)
    assert jnp.allclose(rna_emb, ref_rna_emb, atol=1e-4, rtol=1e-4)
    assert jnp.allclose(atac_emb, ref_atac_emb, atol=1e-4, rtol=1e-4)
    assert jnp.allclose(rna_bn, ref_rna_bn, atol=1e-4, rtol=1e-4)
    assert jnp.allclose(atac_bn, ref_atac_bn, atol=1e-4, rtol=1e-4)

    print("KERNEL_OK")
</pallas_src>

<mosaic_0001>
module attributes {stable_mosaic.version = 11 : i64} {
  func.func @_fused_encoder_kernel(%arg0: i32, %arg1: memref<1x8x128xf32, #tpu.memory_space<vmem>>, %arg2: memref<1x128x128xf32, #tpu.memory_space<vmem>>, %arg3: memref<1x1x128xf32, #tpu.memory_space<vmem>>, %arg4: memref<1x1x128xf32, #tpu.memory_space<vmem>>, %arg5: memref<1x128x128xf32, #tpu.memory_space<vmem>>, %arg6: memref<1x1x128xf32, #tpu.memory_space<vmem>>, %arg7: memref<1x1x128xf32, #tpu.memory_space<vmem>>, %arg8: memref<1x128x128xf32, #tpu.memory_space<vmem>>, %arg9: memref<1x1x128xf32, #tpu.memory_space<vmem>>, %arg10: memref<1x8x128xf32, #tpu.memory_space<vmem>>, %arg11: memref<1x8x128xf32, #tpu.memory_space<vmem>>) attributes {dimension_semantics = [#tpu.dimension_semantics<parallel>], iteration_bounds = array<i64: 2>, scalar_prefetch = 0 : i64, scratch_operands = 0 : i64, tpu.core_type = #tpu.core_type<tc>, window_params = [{transform_indices = @transform_0, window_bounds = array<i64: 1, 8, 128>}, {transform_indices = @transform_1, window_bounds = array<i64: 1, 128, 128>}, {transform_indices = @transform_2, window_bounds = array<i64: 1, 1, 128>}, {transform_indices = @transform_3, window_bounds = array<i64: 1, 1, 128>}, {transform_indices = @transform_4, window_bounds = array<i64: 1, 128, 128>}, {transform_indices = @transform_5, window_bounds = array<i64: 1, 1, 128>}, {transform_indices = @transform_6, window_bounds = array<i64: 1, 1, 128>}, {transform_indices = @transform_7, window_bounds = array<i64: 1, 128, 128>}, {transform_indices = @transform_8, window_bounds = array<i64: 1, 1, 128>}, {transform_indices = @transform_9, window_bounds = array<i64: 1, 8, 128>}, {transform_indices = @transform_10, window_bounds = array<i64: 1, 8, 128>}]} {
    %c0 = arith.constant 0 : index
    %c0_0 = arith.constant 0 : index
    %c0_1 = arith.constant 0 : index
    %0 = vector.load %arg1[%c0, %c0_0, %c0_1] : memref<1x8x128xf32, #tpu.memory_space<vmem>>, vector<1x8x128xf32>
    %1 = vector.shape_cast %0 : vector<1x8x128xf32> to vector<8x128xf32>
    %cst = arith.constant dense<0.000000e+00> : vector<128xf32>
    %2 = vector.multi_reduction <add>, %1, %cst [0] : vector<8x128xf32> to vector<128xf32>
    %3 = vector.shape_cast %2 : vector<128xf32> to vector<1x128xf32>
    %cst_2 = arith.constant 8.000000e+00 : f32
    %4 = vector.broadcast %cst_2 : f32 to vector<1x128xf32>
    %5 = arith.divf %3, %4 : vector<1x128xf32>
    %6 = vector.broadcast %5 : vector<1x128xf32> to vector<8x128xf32>
    %7 = arith.subf %1, %6 : vector<8x128xf32>
    %8 = arith.mulf %7, %7 : vector<8x128xf32>
    %cst_3 = arith.constant dense<0.000000e+00> : vector<128xf32>
    %9 = vector.multi_reduction <add>, %8, %cst_3 [0] : vector<8x128xf32> to vector<128xf32>
    %10 = vector.shape_cast %9 : vector<128xf32> to vector<1x128xf32>
    %cst_4 = arith.constant 8.000000e+00 : f32
    %11 = vector.broadcast %cst_4 : f32 to vector<1x128xf32>
    %12 = arith.divf %10, %11 : vector<1x128xf32>
    %cst_5 = arith.constant 9.99999974E-6 : f32
    %13 = vector.broadcast %cst_5 : f32 to vector<1x128xf32>
    %14 = arith.addf %12, %13 : vector<1x128xf32>
    %15 = math.rsqrt %14 : vector<1x128xf32>
    %16 = vector.broadcast %15 : vector<1x128xf32> to vector<8x128xf32>
    %17 = arith.mulf %1, %16 : vector<8x128xf32>
    %cst_6 = arith.constant 0.000000e+00 : f32
    %18 = vector.broadcast %cst_6 : f32 to vector<1x128xf32>
    %19 = arith.subf %18, %5 : vector<1x128xf32>
    %20 = arith.mulf %19, %15 : vector<1x128xf32>
    %21 = vector.broadcast %20 : vector<1x128xf32> to vector<8x128xf32>
    %22 = arith.addf %17, %21 : vector<8x128xf32>
    %c0_7 = arith.constant 0 : index
    %c0_8 = arith.constant 0 : index
    %c0_9 = arith.constant 0 : index
    %23 = vector.load %arg11[%c0_7, %c0_8, %c0_9] : memref<1x8x128xf32, #tpu.memory_space<vmem>>, vector<1x8x128xf32>
    %24 = vector.shape_cast %23 : vector<1x8x128xf32> to vector<8x128xf32>
    %25 = vector.shape_cast %22 : vector<8x128xf32> to vector<1x8x128xf32>
    tpu.vector_store %arg11[%c0_7, %c0_8, %c0_9], %25 {strides = array<i32>} : memref<1x8x128xf32, #tpu.memory_space<vmem>>, vector<1x8x128xf32>,
    %c0_10 = arith.constant 0 : index
    %c0_11 = arith.constant 0 : index
    %c0_12 = arith.constant 0 : index
    %26 = vector.load %arg2[%c0_10, %c0_11, %c0_12] : memref<1x128x128xf32, #tpu.memory_space<vmem>>, vector<1x128x128xf32>
    %27 = vector.shape_cast %26 : vector<1x128x128xf32> to vector<128x128xf32>
    %cst_13 = arith.constant dense<0.000000e+00> : vector<8x128xf32>
    %28 = tpu.matmul %22, %27, %cst_13 {dimension_numbers = #tpu.dot_dimension_numbers<[1], [0], [0], [1], [0, 0, 1, 1], [], []>} : vector<8x128xf32>, vector<128x128xf32>, vector<8x128xf32> -> vector<8x128xf32>
    %c0_14 = arith.constant 0 : index
    %c0_15 = arith.constant 0 : index
    %c0_16 = arith.constant 0 : index
    %29 = vector.load %arg3[%c0_14, %c0_15, %c0_16] : memref<1x1x128xf32, #tpu.memory_space<vmem>>, vector<1x1x128xf32>
    %30 = vector.shape_cast %29 : vector<1x1x128xf32> to vector<1x128xf32>
    %c0_17 = arith.constant 0 : index
    %c0_18 = arith.constant 0 : index
    %c0_19 = arith.constant 0 : index
    %31 = vector.load %arg4[%c0_17, %c0_18, %c0_19] : memref<1x1x128xf32, #tpu.memory_space<vmem>>, vector<1x1x128xf32>
    %32 = vector.shape_cast %31 : vector<1x1x128xf32> to vector<1x128xf32>
    %cst_20 = arith.constant dense<0.000000e+00> : vector<128xf32>
    %33 = vector.multi_reduction <add>, %28, %cst_20 [0] : vector<8x128xf32> to vector<128xf32>
    %34 = vector.shape_cast %33 : vector<128xf32> to vector<1x128xf32>
    %cst_21 = arith.constant 8.000000e+00 : f32
    %35 = vector.broadcast %cst_21 : f32 to vector<1x128xf32>
    %36 = arith.divf %34, %35 : vector<1x128xf32>
    %37 = vector.broadcast %36 : vector<1x128xf32> to vector<8x128xf32>
    %38 = arith.subf %28, %37 : vector<8x128xf32>
    %39 = arith.mulf %38, %38 : vector<8x128xf32>
    %cst_22 = arith.constant dense<0.000000e+00> : vector<128xf32>
    %40 = vector.multi_reduction <add>, %39, %cst_22 [0] : vector<8x128xf32> to vector<128xf32>
    %41 = vector.shape_cast %40 : vector<128xf32> to vector<1x128xf32>
    %cst_23 = arith.constant 8.000000e+00 : f32
    %42 = vector.broadcast %cst_23 : f32 to vector<1x128xf32>
    %43 = arith.divf %41, %42 : vector<1x128xf32>
    %cst_24 = arith.constant 9.99999974E-6 : f32
    %44 = vector.broadcast %cst_24 : f32 to vector<1x128xf32>
    %45 = arith.addf %43, %44 : vector<1x128xf32>
    %46 = math.rsqrt %45 : vector<1x128xf32>
    %47 = arith.mulf %30, %46 : vector<1x128xf32>
    %48 = arith.mulf %36, %47 : vector<1x128xf32>
    %49 = arith.subf %32, %48 : vector<1x128xf32>
    %50 = vector.broadcast %47 : vector<1x128xf32> to vector<8x128xf32>
    %51 = arith.mulf %28, %50 : vector<8x128xf32>
    %52 = vector.broadcast %49 : vector<1x128xf32> to vector<8x128xf32>
    %53 = arith.addf %51, %52 : vector<8x128xf32>
    %cst_25 = arith.constant 2.000000e-01 : f32
    %54 = vector.broadcast %cst_25 : f32 to vector<8x128xf32>
    %55 = arith.mulf %54, %53 : vector<8x128xf32>
    %56 = arith.maximumf %53, %55 : vector<8x128xf32>
    %c0_26 = arith.constant 0 : index
    %c0_27 = arith.constant 0 : index
    %c0_28 = arith.constant 0 : index
    %57 = vector.load %arg5[%c0_26, %c0_27, %c0_28] : memref<1x128x128xf32, #tpu.memory_space<vmem>>, vector<1x128x128xf32>
    %58 = vector.shape_cast %57 : vector<1x128x128xf32> to vector<128x128xf32>
    %cst_29 = arith.constant dense<0.000000e+00> : vector<8x128xf32>
    %59 = tpu.matmul %56, %58, %cst_29 {dimension_numbers = #tpu.dot_dimension_numbers<[1], [0], [0], [1], [0, 0, 1, 1], [], []>} : vector<8x128xf32>, vector<128x128xf32>, vector<8x128xf32> -> vector<8x128xf32>
    %c0_30 = arith.constant 0 : index
    %c0_31 = arith.constant 0 : index
    %c0_32 = arith.constant 0 : index
    %60 = vector.load %arg6[%c0_30, %c0_31, %c0_32] : memref<1x1x128xf32, #tpu.memory_space<vmem>>, vector<1x1x128xf32>
    %61 = vector.shape_cast %60 : vector<1x1x128xf32> to vector<1x128xf32>
    %c0_33 = arith.constant 0 : index
    %c0_34 = arith.constant 0 : index
    %c0_35 = arith.constant 0 : index
    %62 = vector.load %arg7[%c0_33, %c0_34, %c0_35] : memref<1x1x128xf32, #tpu.memory_space<vmem>>, vector<1x1x128xf32>
    %63 = vector.shape_cast %62 : vector<1x1x128xf32> to vector<1x128xf32>
    %cst_36 = arith.constant dense<0.000000e+00> : vector<128xf32>
    %64 = vector.multi_reduction <add>, %59, %cst_36 [0] : vector<8x128xf32> to vector<128xf32>
    %65 = vector.shape_cast %64 : vector<128xf32> to vector<1x128xf32>
    %cst_37 = arith.constant 8.000000e+00 : f32
    %66 = vector.broadcast %cst_37 : f32 to vector<1x128xf32>
    %67 = arith.divf %65, %66 : vector<1x128xf32>
    %68 = vector.broadcast %67 : vector<1x128xf32> to vector<8x128xf32>
    %69 = arith.subf %59, %68 : vector<8x128xf32>
    %70 = arith.mulf %69, %69 : vector<8x128xf32>
    %cst_38 = arith.constant dense<0.000000e+00> : vector<128xf32>
    %71 = vector.multi_reduction <add>, %70, %cst_38 [0] : vector<8x128xf32> to vector<128xf32>
    %72 = vector.shape_cast %71 : vector<128xf32> to vector<1x128xf32>
    %cst_39 = arith.constant 8.000000e+00 : f32
    %73 = vector.broadcast %cst_39 : f32 to vector<1x128xf32>
    %74 = arith.divf %72, %73 : vector<1x128xf32>
    %cst_40 = arith.constant 9.99999974E-6 : f32
    %75 = vector.broadcast %cst_40 : f32 to vector<1x128xf32>
    %76 = arith.addf %74, %75 : vector<1x128xf32>
    %77 = math.rsqrt %76 : vector<1x128xf32>
    %78 = arith.mulf %61, %77 : vector<1x128xf32>
    %79 = arith.mulf %67, %78 : vector<1x128xf32>
    %80 = arith.subf %63, %79 : vector<1x128xf32>
    %81 = vector.broadcast %78 : vector<1x128xf32> to vector<8x128xf32>
    %82 = arith.mulf %59, %81 : vector<8x128xf32>
    %83 = vector.broadcast %80 : vector<1x128xf32> to vector<8x128xf32>
    %84 = arith.addf %82, %83 : vector<8x128xf32>
    %cst_41 = arith.constant 2.000000e-01 : f32
    %85 = vector.broadcast %cst_41 : f32 to vector<8x128xf32>
    %86 = arith.mulf %85, %84 : vector<8x128xf32>
    %87 = arith.maximumf %84, %86 : vector<8x128xf32>
    %c0_42 = arith.constant 0 : index
    %c0_43 = arith.constant 0 : index
    %c0_44 = arith.constant 0 : index
    %88 = vector.load %arg8[%c0_42, %c0_43, %c0_44] : memref<1x128x128xf32, #tpu.memory_space<vmem>>, vector<1x128x128xf32>
    %89 = vector.shape_cast %88 : vector<1x128x128xf32> to vector<128x128xf32>
    %cst_45 = arith.constant dense<0.000000e+00> : vector<8x128xf32>
    %90 = tpu.matmul %87, %89, %cst_45 {dimension_numbers = #tpu.dot_dimension_numbers<[1], [0], [0], [1], [0, 0, 1, 1], [], []>} : vector<8x128xf32>, vector<128x128xf32>, vector<8x128xf32> -> vector<8x128xf32>
    %c0_46 = arith.constant 0 : index
    %c0_47 = arith.constant 0 : index
    %c0_48 = arith.constant 0 : index
    %91 = vector.load %arg9[%c0_46, %c0_47, %c0_48] : memref<1x1x128xf32, #tpu.memory_space<vmem>>, vector<1x1x128xf32>
    %92 = vector.shape_cast %91 : vector<1x1x128xf32> to vector<1x128xf32>
    %93 = vector.broadcast %92 : vector<1x128xf32> to vector<8x128xf32>
    %94 = arith.addf %90, %93 : vector<8x128xf32>
    %c0_49 = arith.constant 0 : index
    %c0_50 = arith.constant 0 : index
    %c0_51 = arith.constant 0 : index
    %95 = vector.load %arg10[%c0_49, %c0_50, %c0_51] : memref<1x8x128xf32, #tpu.memory_space<vmem>>, vector<1x8x128xf32>
    %96 = vector.shape_cast %95 : vector<1x8x128xf32> to vector<8x128xf32>
    %97 = vector.shape_cast %94 : vector<8x128xf32> to vector<1x8x128xf32>
    tpu.vector_store %arg10[%c0_49, %c0_50, %c0_51], %97 {strides = array<i32>} : memref<1x8x128xf32, #tpu.memory_space<vmem>>, vector<1x8x128xf32>,
    return
  }
  func.func @transform_0(%arg0: i32) -> (i32, i32, i32) {
    %c0_i32 = arith.constant 0 : i32
    %c0_i32_0 = arith.constant 0 : i32
    %c0_i32_1 = arith.constant 0 : i32
    return %arg0, %c0_i32, %c0_i32_0 : i32, i32, i32
  }
  func.func @transform_1(%arg0: i32) -> (i32, i32, i32) {
    %c0_i32 = arith.constant 0 : i32
    %c0_i32_0 = arith.constant 0 : i32
    %c0_i32_1 = arith.constant 0 : i32
    return %arg0, %c0_i32, %c0_i32_0 : i32, i32, i32
  }
  func.func @transform_2(%arg0: i32) -> (i32, i32, i32) {
    %c0_i32 = arith.constant 0 : i32
    %c0_i32_0 = arith.constant 0 : i32
    %c0_i32_1 = arith.constant 0 : i32
    return %arg0, %c0_i32, %c0_i32_0 : i32, i32, i32
  }
  func.func @transform_3(%arg0: i32) -> (i32, i32, i32) {
    %c0_i32 = arith.constant 0 : i32
    %c0_i32_0 = arith.constant 0 : i32
    %c0_i32_1 = arith.constant 0 : i32
    return %arg0, %c0_i32, %c0_i32_0 : i32, i32, i32
  }
  func.func @transform_4(%arg0: i32) -> (i32, i32, i32) {
    %c0_i32 = arith.constant 0 : i32
    %c0_i32_0 = arith.constant 0 : i32
    %c0_i32_1 = arith.constant 0 : i32
    return %arg0, %c0_i32, %c0_i32_0 : i32, i32, i32
  }
  func.func @transform_5(%arg0: i32) -> (i32, i32, i32) {
    %c0_i32 = arith.constant 0 : i32
    %c0_i32_0 = arith.constant 0 : i32
    %c0_i32_1 = arith.constant 0 : i32
    return %arg0, %c0_i32, %c0_i32_0 : i32, i32, i32
  }
  func.func @transform_6(%arg0: i32) -> (i32, i32, i32) {
    %c0_i32 = arith.constant 0 : i32
    %c0_i32_0 = arith.constant 0 : i32
    %c0_i32_1 = arith.constant 0 : i32
    return %arg0, %c0_i32, %c0_i32_0 : i32, i32, i32
  }
  func.func @transform_7(%arg0: i32) -> (i32, i32, i32) {
    %c0_i32 = arith.constant 0 : i32
    %c0_i32_0 = arith.constant 0 : i32
    %c0_i32_1 = arith.constant 0 : i32
    return %arg0, %c0_i32, %c0_i32_0 : i32, i32, i32
  }
  func.func @transform_8(%arg0: i32) -> (i32, i32, i32) {
    %c0_i32 = arith.constant 0 : i32
    %c0_i32_0 = arith.constant 0 : i32
    %c0_i32_1 = arith.constant 0 : i32
    return %arg0, %c0_i32, %c0_i32_0 : i32, i32, i32
  }
  func.func @transform_9(%arg0: i32) -> (i32, i32, i32) {
    %c0_i32 = arith.constant 0 : i32
    %c0_i32_0 = arith.constant 0 : i32
    %c0_i32_1 = arith.constant 0 : i32
    return %arg0, %c0_i32, %c0_i32_0 : i32, i32, i32
  }
  func.func @transform_10(%arg0: i32) -> (i32, i32, i32) {
    %c0_i32 = arith.constant 0 : i32
    %c0_i32_0 = arith.constant 0 : i32
    %c0_i32_1 = arith.constant 0 : i32
    return %arg0, %c0_i32, %c0_i32_0 : i32, i32, i32
  }
}

</mosaic_0001>

<llo_original>
// kernel: bn_common_encoder_forward.1
$region0: #{bn_common_encoder_forward.1}
  #allocation0 [shape = 'u32[]', space=smem, size = 0x4, offset = 0x4, fixed_abs, tag = 'smem constant byte address 0x4 - core index']
  #allocation1 [shape = 'u32[144,128]{1,0:T(1,128)}', space=vmem, size = 0x12000, scoped, tag = 'internal scratch']
  %s0 = inlined_call_operand.vmem [shape: f32[2,8,128], index: 0, kind: input, shape index: {}]
  %s1 = inlined_call_operand.vmem [shape: f32[2,128,128], index: 1, kind: input, shape index: {}]
  %s2 = inlined_call_operand.vmem [shape: f32[2,1,128], index: 2, kind: input, shape index: {}]
  %s3 = inlined_call_operand.vmem [shape: f32[2,1,128], index: 3, kind: input, shape index: {}]
  %s4 = inlined_call_operand.vmem [shape: f32[2,128,128], index: 4, kind: input, shape index: {}]
  %s5 = inlined_call_operand.vmem [shape: f32[2,1,128], index: 5, kind: input, shape index: {}]
  %s6 = inlined_call_operand.vmem [shape: f32[2,1,128], index: 6, kind: input, shape index: {}]
  %s7 = inlined_call_operand.vmem [shape: f32[2,128,128], index: 7, kind: input, shape index: {}]
  %s8 = inlined_call_operand.vmem [shape: f32[2,1,128], index: 8, kind: input, shape index: {}]
  %s9 = inlined_call_operand.vmem [shape: f32[2,8,128], index: 9, kind: output, shape index: {0}]
  %s10 = inlined_call_operand.vmem [shape: f32[2,8,128], index: 10, kind: output, shape index: {1}]
  %11 = xla_tuple %s9, %s10
  %s12 = sld [smem:[#allocation0]]
  $region77: #{bn_common_encoder_forward.1} parent=0
    _
  %s14 = ssub.s32 1, %s12
  %s15 = scalar_select 0, %s14, %s12
  loop: start=0, step=1, limit=4
  $region2: #{bn_common_encoder_forward.1} parent=0 // loop_pre_header
    _
  $region3: #{bn_common_encoder_forward.1} parent=0 // loop_header
    %s17 = sphi 0, %s21
    %p18 = scmp.ge.s32.totalorder %s17, 4
    %s27 = sphi 0, %s29
    %s30 = sphi 0, %s27
    %s31 = sphi 0, %s30
    %s47 = sphi 0, %s31
    %s53 = sphi 0, %s55
    %s56 = sphi 0, %s53
    %s57 = sphi 0, %s56
    %s73 = sphi 0, %s57
    %s79 = sphi 0, %s81
    %s82 = sphi 0, %s79
    %s83 = sphi 0, %s82
    %s99 = sphi 0, %s83
    %s105 = sphi 0, %s107
    %s108 = sphi 0, %s105
    %s109 = sphi 0, %s108
    %s125 = sphi 0, %s109
    %s131 = sphi 0, %s133
    %s134 = sphi 0, %s131
    %s135 = sphi 0, %s134
    %s151 = sphi 0, %s135
    %s157 = sphi 0, %s159
    %s160 = sphi 0, %s157
    %s161 = sphi 0, %s160
    %s177 = sphi 0, %s161
    %s183 = sphi 0, %s185
    %s186 = sphi 0, %s183
    %s187 = sphi 0, %s186
    %s203 = sphi 0, %s187
    %s209 = sphi 0, %s211
    %s212 = sphi 0, %s209
    %s213 = sphi 0, %s212
    %s229 = sphi 0, %s213
    %s235 = sphi 0, %s237
    %s238 = sphi 0, %s235
    %s239 = sphi 0, %s238
    %s255 = sphi 0, %s239
    %s261 = sphi 0, %s263
    %s264 = sphi 0, %s261
    %s265 = sphi 0, %s264
    %s281 = sphi 0, %s265
    %s287 = sphi 0, %s289
    %s290 = sphi 0, %s287
    %s291 = sphi 0, %s290
    %s307 = sphi 0, %s291
  $region4: #{bn_common_encoder_forward.1} parent=0 // loop_header_branch
    %20 = sbr.rel (%p18) target = $region8
  $region5: #{bn_common_encoder_forward.1} parent=0 // loop_body
    %s22 = ssub.s32 %s17, 1
    %s23 = ssub.s32 %s17, 2
    %s24 = sadd.s32 %s17, 1
    %s25 = ssub.s32 %s17, %s24
    %p26 = scmp.eq.s32.totalorder %s25, 0
    %s28 = sadd.s32 %s27, 1
    %s29 = scalar_select %p26, %s27, %s28
    %p32 = pneg %p26
    %p33 = scmp.eq.s32.totalorder %s17, 1
    %p34 = por %p32, %p33
    %p35 = scmp.ne.s32.totalorder %s27, %s30
    %p36 = scmp.eq.s32.totalorder %s17, 0
    %p37 = por %p35, %p36
    %p38 = scmp.ne.s32.totalorder %s27, %s30
    %p39 = scmp.eq.s32.totalorder %s22, 1
    %p40 = por %p38, %p39
    %p41 = scmp.ne.s32.totalorder %s30, %s31
    %p42 = scmp.eq.s32.totalorder %s22, 0
    %p43 = por %p41, %p42
    %p44 = scmp.ne.s32.totalorder %s30, %s31
    %p45 = scmp.eq.s32.totalorder %s23, 1
    %p46 = por %p44, %p45
    %p48 = scmp.ne.s32.totalorder %s31, %s47
    %p49 = scmp.eq.s32.totalorder %s23, 0
    %p50 = por %p48, %p49
    %s51 = ssub.s32 %s17, %s24
    %p52 = scmp.eq.s32.totalorder %s51, 0
    %s54 = sadd.s32 %s53, 1
    %s55 = scalar_select %p52, %s53, %s54
    %p58 = pneg %p52
    %p59 = scmp.eq.s32.totalorder %s17, 1
    %p60 = por %p58, %p59
    %p61 = scmp.ne.s32.totalorder %s53, %s56
    %p62 = scmp.eq.s32.totalorder %s17, 0
    %p63 = por %p61, %p62
    %p64 = scmp.ne.s32.totalorder %s53, %s56
    %p65 = scmp.eq.s32.totalorder %s22, 1
    %p66 = por %p64, %p65
    %p67 = scmp.ne.s32.totalorder %s56, %s57
    %p68 = scmp.eq.s32.totalorder %s22, 0
    %p69 = por %p67, %p68
    %p70 = scmp.ne.s32.totalorder %s56, %s57
    %p71 = scmp.eq.s32.totalorder %s23, 1
    %p72 = por %p70, %p71
    %p74 = scmp.ne.s32.totalorder %s57, %s73
    %p75 = scmp.eq.s32.totalorder %s23, 0
    %p76 = por %p74, %p75
    %s77 = ssub.s32 %s17, %s24
    %p78 = scmp.eq.s32.totalorder %s77, 0
    %s80 = sadd.s32 %s79, 1
    %s81 = scalar_select %p78, %s79, %s80
    %p84 = pneg %p78
    %p85 = scmp.eq.s32.totalorder %s17, 1
    %p86 = por %p84, %p85
    %p87 = scmp.ne.s32.totalorder %s79, %s82
    %p88 = scmp.eq.s32.totalorder %s17, 0
    %p89 = por %p87, %p88
    %p90 = scmp.ne.s32.totalorder %s79, %s82
    %p91 = scmp.eq.s32.totalorder %s22, 1
    %p92 = por %p90, %p91
    %p93 = scmp.ne.s32.totalorder %s82, %s83
    %p94 = scmp.eq.s32.totalorder %s22, 0
    %p95 = por %p93, %p94
    %p96 = scmp.ne.s32.totalorder %s82, %s83
    %p97 = scmp.eq.s32.totalorder %s23, 1
    %p98 = por %p96, %p97
    %p100 = scmp.ne.s32.totalorder %s83, %s99
    %p101 = scmp.eq.s32.totalorder %s23, 0
    %p102 = por %p100, %p101
    %s103 = ssub.s32 %s17, %s24
    %p104 = scmp.eq.s32.totalorder %s103, 0
    %s106 = sadd.s32 %s105, 1
    %s107 = scalar_select %p104, %s105, %s106
    %p110 = pneg %p104
    %p111 = scmp.eq.s32.totalorder %s17, 1
    %p112 = por %p110, %p111
    %p113 = scmp.ne.s32.totalorder %s105, %s108
    %p114 = scmp.eq.s32.totalorder %s17, 0
    %p115 = por %p113, %p114
    %p116 = scmp.ne.s32.totalorder %s105, %s108
    %p117 = scmp.eq.s32.totalorder %s22, 1
    %p118 = por %p116, %p117
    %p119 = scmp.ne.s32.totalorder %s108, %s109
    %p120 = scmp.eq.s32.totalorder %s22, 0
    %p121 = por %p119, %p120
    %p122 = scmp.ne.s32.totalorder %s108, %s109
    %p123 = scmp.eq.s32.totalorder %s23, 1
    %p124 = por %p122, %p123
    %p126 = scmp.ne.s32.totalorder %s109, %s125
    %p127 = scmp.eq.s32.totalorder %s23, 0
    %p128 = por %p126, %p127
    %s129 = ssub.s32 %s17, %s24
    %p130 = scmp.eq.s32.totalorder %s129, 0
    %s132 = sadd.s32 %s131, 1
    %s133 = scalar_select %p130, %s131, %s132
    %p136 = pneg %p130
    %p137 = scmp.eq.s32.totalorder %s17, 1
    %p138 = por %p136, %p137
    %p139 = scmp.ne.s32.totalorder %s131, %s134
    %p140 = scmp.eq.s32.totalorder %s17, 0
    %p141 = por %p139, %p140
    %p142 = scmp.ne.s32.totalorder %s131, %s134
    %p143 = scmp.eq.s32.totalorder %s22, 1
    %p144 = por %p142, %p143
    %p145 = scmp.ne.s32.totalorder %s134, %s135
    %p146 = scmp.eq.s32.totalorder %s22, 0
    %p147 = por %p145, %p146
    %p148 = scmp.ne.s32.totalorder %s134, %s135
    %p149 = scmp.eq.s32.totalorder %s23, 1
    %p150 = por %p148, %p149
    %p152 = scmp.ne.s32.totalorder %s135, %s151
    %p153 = scmp.eq.s32.totalorder %s23, 0
    %p154 = por %p152, %p153
    %s155 = ssub.s32 %s17, %s24
    %p156 = scmp.eq.s32.totalorder %s155, 0
    %s158 = sadd.s32 %s157, 1
    %s159 = scalar_select %p156, %s157, %s158
    %p162 = pneg %p156
    %p163 = scmp.eq.s32.totalorder %s17, 1
    %p164 = por %p162, %p163
    %p165 = scmp.ne.s32.totalorder %s157, %s160
    %p166 = scmp.eq.s32.totalorder %s17, 0
    %p167 = por %p165, %p166
    %p168 = scmp.ne.s32.totalorder %s157, %s160
    %p169 = scmp.eq.s32.totalorder %s22, 1
    %p170 = por %p168, %p169
    %p171 = scmp.ne.s32.totalorder %s160, %s161
    %p172 = scmp.eq.s32.totalorder %s22, 0
    %p173 = por %p171, %p172
    %p174 = scmp.ne.s32.totalorder %s160, %s161
    %p175 = scmp.eq.s32.totalorder %s23, 1
    %p176 = por %p174, %p175
    %p178 = scmp.ne.s32.totalorder %s161, %s177
    %p179 = scmp.eq.s32.totalorder %s23, 0
    %p180 = por %p178, %p179
    %s181 = ssub.s32 %s17, %s24
    %p182 = scmp.eq.s32.totalorder %s181, 0
    %s184 = sadd.s32 %s183, 1
    %s185 = scalar_select %p182, %s183, %s184
    %p188 = pneg %p182
    %p189 = scmp.eq.s32.totalorder %s17, 1
    %p190 = por %p188, %p189
    %p191 = scmp.ne.s32.totalorder %s183, %s186
    %p192 = scmp.eq.s32.totalorder %s17, 0
    %p193 = por %p191, %p192
    %p194 = scmp.ne.s32.totalorder %s183, %s186
    %p195 = scmp.eq.s32.totalorder %s22, 1
    %p196 = por %p194, %p195
    %p197 = scmp.ne.s32.totalorder %s186, %s187
    %p198 = scmp.eq.s32.totalorder %s22, 0
    %p199 = por %p197, %p198
    %p200 = scmp.ne.s32.totalorder %s186, %s187
    %p201 = scmp.eq.s32.totalorder %s23, 1
    %p202 = por %p200, %p201
    %p204 = scmp.ne.s32.totalorder %s187, %s203
    %p205 = scmp.eq.s32.totalorder %s23, 0
    %p206 = por %p204, %p205
    %s207 = ssub.s32 %s17, %s24
    %p208 = scmp.eq.s32.totalorder %s207, 0
    %s210 = sadd.s32 %s209, 1
    %s211 = scalar_select %p208, %s209, %s210
    %p214 = pneg %p208
    %p215 = scmp.eq.s32.totalorder %s17, 1
    %p216 = por %p214, %p215
    %p217 = scmp.ne.s32.totalorder %s209, %s212
    %p218 = scmp.eq.s32.totalorder %s17, 0
    %p219 = por %p217, %p218
    %p220 = scmp.ne.s32.totalorder %s209, %s212
    %p221 = scmp.eq.s32.totalorder %s22, 1
    %p222 = por %p220, %p221
    %p223 = scmp.ne.s32.totalorder %s212, %s213
    %p224 = scmp.eq.s32.totalorder %s22, 0
    %p225 = por %p223, %p224
    %p226 = scmp.ne.s32.totalorder %s212, %s213
    %p227 = scmp.eq.s32.totalorder %s23, 1
    %p228 = por %p226, %p227
    %p230 = scmp.ne.s32.totalorder %s213, %s229
    %p231 = scmp.eq.s32.totalorder %s23, 0
    %p232 = por %p230, %p231
    %s233 = ssub.s32 %s17, %s24
    %p234 = scmp.eq.s32.totalorder %s233, 0
    %s236 = sadd.s32 %s235, 1
    %s237 = scalar_select %p234, %s235, %s236
    %p240 = pneg %p234
    %p241 = scmp.eq.s32.totalorder %s17, 1
    %p242 = por %p240, %p241
    %p243 = scmp.ne.s32.totalorder %s235, %s238
    %p244 = scmp.eq.s32.totalorder %s17, 0
    %p245 = por %p243, %p244
    %p246 = scmp.ne.s32.totalorder %s235, %s238
    %p247 = scmp.eq.s32.totalorder %s22, 1
    %p248 = por %p246, %p247
    %p249 = scmp.ne.s32.totalorder %s238, %s239
    %p250 = scmp.eq.s32.totalorder %s22, 0
    %p251 = por %p249, %p250
    %p252 = scmp.ne.s32.totalorder %s238, %s239
    %p253 = scmp.eq.s32.totalorder %s23, 1
    %p254 = por %p252, %p253
    %p256 = scmp.ne.s32.totalorder %s239, %s255
    %p257 = scmp.eq.s32.totalorder %s23, 0
    %p258 = por %p256, %p257
    %s259 = ssub.s32 %s17, %s24
    %p260 = scmp.eq.s32.totalorder %s259, 0
    %s262 = sadd.s32 %s261, 1
    %s263 = scalar_select %p260, %s261, %s262
    %p266 = pneg %p260
    %p267 = scmp.eq.s32.totalorder %s17, 1
    %p268 = por %p266, %p267
    %p269 = scmp.ne.s32.totalorder %s261, %s264
    %p270 = scmp.eq.s32.totalorder %s17, 0
    %p271 = por %p269, %p270
    %p272 = scmp.ne.s32.totalorder %s261, %s264
    %p273 = scmp.eq.s32.totalorder %s22, 1
    %p274 = por %p272, %p273
    %p275 = scmp.ne.s32.totalorder %s264, %s265
    %p276 = scmp.eq.s32.totalorder %s22, 0
    %p277 = por %p275, %p276
    %p278 = scmp.ne.s32.totalorder %s264, %s265
    %p279 = scmp.eq.s32.totalorder %s23, 1
    %p280 = por %p278, %p279
    %p282 = scmp.ne.s32.totalorder %s265, %s281
    %p283 = scmp.eq.s32.totalorder %s23, 0
    %p284 = por %p282, %p283
    %s285 = ssub.s32 %s17, %s24
    %p286 = scmp.eq.s32.totalorder %s285, 0
    %s288 = sadd.s32 %s287, 1
    %s289 = scalar_select %p286, %s287, %s288
    %p292 = pneg %p286
    %p293 = scmp.eq.s32.totalorder %s17, 1
    %p294 = por %p292, %p293
    %p295 = scmp.ne.s32.totalorder %s287, %s290
    %p296 = scmp.eq.s32.totalorder %s17, 0
    %p297 = por %p295, %p296
    %p298 = scmp.ne.s32.totalorder %s287, %s290
    %p299 = scmp.eq.s32.totalorder %s22, 1
    %p300 = por %p298, %p299
    %p301 = scmp.ne.s32.totalorder %s290, %s291
    %p302 = scmp.eq.s32.totalorder %s22, 0
    %p303 = por %p301, %p302
    %p304 = scmp.ne.s32.totalorder %s290, %s291
    %p305 = scmp.eq.s32.totalorder %s23, 1
    %p306 = por %p304, %p305
    %p308 = scmp.ne.s32.totalorder %s291, %s307
    %p309 = scmp.eq.s32.totalorder %s23, 0
    %p310 = por %p308, %p309
    %p311 = scmp.le.s32.totalorder 1, %s17
    %p312 = scmp.lt.s32.totalorder %s17, 3
    %p313 = pnand %p311, %p312
    %p314 = pneg %p313
    // Predicated region
    $region9: #{bn_common_encoder_forward.1} parent=5 // pred_check
      _
    $region10: #{bn_common_encoder_forward.1} parent=5 // pred_check_branch
      %316 = sbr.rel (%p313) target = $region12
    $region11: #{bn_common_encoder_forward.1} parent=5 // pred_region
      %s317 = ssub.s32 %s17, 1
    $region12: #{bn_common_encoder_forward.1} parent=5 // pred_fallthru
      _
    %p318 = scmp.lt.s32.totalorder %s17, 2
    // Predicated region
    $region13: #{bn_common_encoder_forward.1} parent=5 // pred_check
      %p319 = pneg %p318
    $region14: #{bn_common_encoder_forward.1} parent=5 // pred_check_branch
      %321 = sbr.rel (%p319) target = $region16
    $region15: #{bn_common_encoder_forward.1} parent=5 // pred_region
      // Predicated region
      $region17: #{bn_common_encoder_forward.1} parent=15 // pred_check
        %p322 = pneg %p37
      $region18: #{bn_common_encoder_forward.1} parent=15 // pred_check_branch
        %324 = sbr.rel (%p322) target = $region20
      $region19: #{bn_common_encoder_forward.1} parent=15 // pred_region
        %p325 = scmp.lt.s32.totalorder %s17, 1
        %s326 = scalar_select %p325, %s17, 1
        %s327 = smul.addr %s326, 8
        %s328 = scalar_lea.vmem %s0, %s327
      $region20: #{bn_common_encoder_forward.1} parent=15 // pred_fallthru
        _
      // Predicated region
      $region21: #{bn_common_encoder_forward.1} parent=15 // pred_check
        %p329 = pneg %p63
      $region22: #{bn_common_encoder_forward.1} parent=15 // pred_check_branch
        %331 = sbr.rel (%p329) target = $region24
      $region23: #{bn_common_encoder_forward.1} parent=15 // pred_region
        %p332 = scmp.lt.s32.totalorder %s17, 1
        %s333 = scalar_select %p332, %s17, 1
        %s334 = smul.addr %s333, 16
        %s335 = smul.addr %s334, 8
        %s336 = scalar_lea.vmem %s1, %s335
      $region24: #{bn_common_encoder_forward.1} parent=15 // pred_fallthru
        _
      // Predicated region
      $region25: #{bn_common_encoder_forward.1} parent=15 // pred_check
        %p337 = pneg %p89
      $region26: #{bn_common_encoder_forward.1} parent=15 // pred_check_branch
        %339 = sbr.rel (%p337) target = $region28
      $region27: #{bn_common_encoder_forward.1} parent=15 // pred_region
        %p340 = scmp.lt.s32.totalorder %s17, 1
        %s341 = scalar_select %p340, %s17, 1
        %s342 = scalar_lea.vmem %s2, %s341
      $region28: #{bn_common_encoder_forward.1} parent=15 // pred_fallthru
        _
      // Predicated region
      $region29: #{bn_common_encoder_forward.1} parent=15 // pred_check
        %p343 = pneg %p115
      $region30: #{bn_common_encoder_forward.1} parent=15 // pred_check_branch
        %345 = sbr.rel (%p343) target = $region32
      $region31: #{bn_common_encoder_forward.1} parent=15 // pred_region
        %p346 = scmp.lt.s32.totalorder %s17, 1
        %s347 = scalar_select %p346, %s17, 1
        %s348 = scalar_lea.vmem %s3, %s347
      $region32: #{bn_common_encoder_forward.1} parent=15 // pred_fallthru
        _
      // Predicated region
      $region33: #{bn_common_encoder_forward.1} parent=15 // pred_check
        %p349 = pneg %p141
      $region34: #{bn_common_encoder_forward.1} parent=15 // pred_check_branch
        %351 = sbr.rel (%p349) target = $region36
      $region35: #{bn_common_encoder_forward.1} parent=15 // pred_region
        %p352 = scmp.lt.s32.totalorder %s17, 1
        %s353 = scalar_select %p352, %s17, 1
        %s354 = smul.addr %s353, 16
        %s355 = smul.addr %s354, 8
        %s356 = scalar_lea.vmem %s4, %s355
      $region36: #{bn_common_encoder_forward.1} parent=15 // pred_fallthru
        _
      // Predicated region
      $region37: #{bn_common_encoder_forward.1} parent=15 // pred_check
        %p357 = pneg %p167
      $region38: #{bn_common_encoder_forward.1} parent=15 // pred_check_branch
        %359 = sbr.rel (%p357) target = $region40
      $region39: #{bn_common_encoder_forward.1} parent=15 // pred_region
        %p360 = scmp.lt.s32.totalorder %s17, 1
        %s361 = scalar_select %p360, %s17, 1
        %s362 = scalar_lea.vmem %s5, %s361
      $region40: #{bn_common_encoder_forward.1} parent=15 // pred_fallthru
        _
      // Predicated region
      $region41: #{bn_common_encoder_forward.1} parent=15 // pred_check
        %p363 = pneg %p193
      $region42: #{bn_common_encoder_forward.1} parent=15 // pred_check_branch
        %365 = sbr.rel (%p363) target = $region44
      $region43: #{bn_common_encoder_forward.1} parent=15 // pred_region
        %p366 = scmp.lt.s32.totalorder %s17, 1
        %s367 = scalar_select %p366, %s17, 1
        %s368 = scalar_lea.vmem %s6, %s367
      $region44: #{bn_common_encoder_forward.1} parent=15 // pred_fallthru
        _
      // Predicated region
      $region45: #{bn_common_encoder_forward.1} parent=15 // pred_check
        %p369 = pneg %p219
      $region46: #{bn_common_encoder_forward.1} parent=15 // pred_check_branch
        %371 = sbr.rel (%p369) target = $region48
      $region47: #{bn_common_encoder_forward.1} parent=15 // pred_region
        %p372 = scmp.lt.s32.totalorder %s17, 1
        %s373 = scalar_select %p372, %s17, 1
        %s374 = smul.addr %s373, 16
        %s375 = smul.addr %s374, 8
        %s376 = scalar_lea.vmem %s7, %s375
      $region48: #{bn_common_encoder_forward.1} parent=15 // pred_fallthru
        _
      // Predicated region
      $region49: #{bn_common_encoder_forward.1} parent=15 // pred_check
        %p377 = pneg %p245
      $region50: #{bn_common_encoder_forward.1} parent=15 // pred_check_branch
        %379 = sbr.rel (%p377) target = $region52
      $region51: #{bn_common_encoder_forward.1} parent=15 // pred_region
        %p380 = scmp.lt.s32.totalorder %s17, 1
        %s381 = scalar_select %p380, %s17, 1
        %s382 = scalar_lea.vmem %s8, %s381
      $region52: #{bn_common_encoder_forward.1} parent=15 // pred_fallthru
        _
    $region16: #{bn_common_encoder_forward.1} parent=5 // pred_fallthru
      _
    %p383 = scmp.le.s32.totalorder 1, %s17
    %p384 = scmp.lt.s32.totalorder %s17, 3
    %p385 = pnand %p383, %p384
    %p386 = pneg %p385
    // Predicated region
    $region53: #{bn_common_encoder_forward.1} parent=5 // pred_check
      _
    $region54: #{bn_common_encoder_forward.1} parent=5 // pred_check_branch
      %388 = sbr.rel (%p385) target = $region56
    $region55: #{bn_common_encoder_forward.1} parent=5 // pred_region
      %s389 = ssub.s32 %s17, 1
      %p390 = scmp.lt.s32.totalorder %s22, 1
      %s391 = scalar_select %p390, %s22, 1
      %s392 = smul.addr %s391, 8
      %s393 = scalar_lea.vmem %s0, %s392
      %p394 = pneg %p43
      %p395 = pneg %p40
      %p396 = scmp.lt.s32.totalorder %s22, 1
      %s397 = scalar_select %p396, %s22, 1
      %s398 = smul.addr %s397, 16
      %s399 = smul.addr %s398, 8
      %s400 = scalar_lea.vmem %s1, %s399
      %p401 = pneg %p69
      %p402 = pneg %p66
      %p403 = scmp.lt.s32.totalorder %s22, 1
      %s404 = scalar_select %p403, %s22, 1
      %s405 = scalar_lea.vmem %s2, %s404
      %p406 = pneg %p95
      %p407 = pneg %p92
      %p408 = scmp.lt.s32.totalorder %s22, 1
      %s409 = scalar_select %p408, %s22, 1
      %s410 = scalar_lea.vmem %s3, %s409
      %p411 = pneg %p121
      %p412 = pneg %p118
      %p413 = scmp.lt.s32.totalorder %s22, 1
      %s414 = scalar_select %p413, %s22, 1
      %s415 = smul.addr %s414, 16
      %s416 = smul.addr %s415, 8
      %s417 = scalar_lea.vmem %s4, %s416
      %p418 = pneg %p147
      %p419 = pneg %p144
      %p420 = scmp.lt.s32.totalorder %s22, 1
      %s421 = scalar_select %p420, %s22, 1
      %s422 = scalar_lea.vmem %s5, %s421
      %p423 = pneg %p173
      %p424 = pneg %p170
      %p425 = scmp.lt.s32.totalorder %s22, 1
      %s426 = scalar_select %p425, %s22, 1
      %s427 = scalar_lea.vmem %s6, %s426
      %p428 = pneg %p199
      %p429 = pneg %p196
      %p430 = scmp.lt.s32.totalorder %s22, 1
      %s431 = scalar_select %p430, %s22, 1
      %s432 = smul.addr %s431, 16
      %s433 = smul.addr %s432, 8
      %s434 = scalar_lea.vmem %s7, %s433
      %p435 = pneg %p225
      %p436 = pneg %p222
      %p437 = scmp.lt.s32.totalorder %s22, 1
      %s438 = scalar_select %p437, %s22, 1
      %s439 = scalar_lea.vmem %s8, %s438
      %p440 = pneg %p251
      %p441 = pneg %p248
      %p442 = pneg %p277
      %p443 = pneg %p274
      %p444 = scmp.lt.s32.totalorder %s22, 1
      %s445 = scalar_select %p444, %s22, 1
      %s446 = smul.addr %s445, 8
      %s447 = scalar_lea.vmem %s9, %s446
      %p448 = pneg %p303
      %p449 = pneg %p300
      %p450 = scmp.lt.s32.totalorder %s22, 1
      %s451 = scalar_select %p450, %s22, 1
      %s452 = smul.addr %s451, 8
      %s453 = scalar_lea.vmem %s10, %s452
      %p454 = scmp.lt.s32.totalorder %s22, 1
      %s455 = scalar_select %p454, %s22, 1
      %s456 = smul.addr %s455, 8
      %s457 = scalar_lea.vmem %s0, %s456
      %p458 = scmp.lt.s32.totalorder %s22, 1
      %s459 = scalar_select %p458, %s22, 1
      %s460 = smul.addr %s459, 16
      %s461 = smul.addr %s460, 8
      %s462 = scalar_lea.vmem %s1, %s461
      %p463 = scmp.lt.s32.totalorder %s22, 1
      %s464 = scalar_select %p463, %s22, 1
      %s465 = scalar_lea.vmem %s2, %s464
      %p466 = scmp.lt.s32.totalorder %s22, 1
      %s467 = scalar_select %p466, %s22, 1
      %s468 = scalar_lea.vmem %s3, %s467
      %p469 = scmp.lt.s32.totalorder %s22, 1
      %s470 = scalar_select %p469, %s22, 1
      %s471 = smul.addr %s470, 16
      %s472 = smul.addr %s471, 8
      %s473 = scalar_lea.vmem %s4, %s472
      %p474 = scmp.lt.s32.totalorder %s22, 1
      %s475 = scalar_select %p474, %s22, 1
      %s476 = scalar_lea.vmem %s5, %s475
      %p477 = scmp.lt.s32.totalorder %s22, 1
      %s478 = scalar_select %p477, %s22, 1
      %s479 = scalar_lea.vmem %s6, %s478
      %p480 = scmp.lt.s32.totalorder %s22, 1
      %s481 = scalar_select %p480, %s22, 1
      %s482 = smul.addr %s481, 16
      %s483 = smul.addr %s482, 8
      %s484 = scalar_lea.vmem %s7, %s483
      %p485 = scmp.lt.s32.totalorder %s22, 1
      %s486 = scalar_select %p485, %s22, 1
      %s487 = scalar_lea.vmem %s8, %s486
      %p488 = scmp.lt.s32.totalorder %s22, 1
      %s489 = scalar_select %p488, %s22, 1
      %s490 = smul.addr %s489, 8
      %s491 = scalar_lea.vmem %s9, %s490
      %p492 = scmp.lt.s32.totalorder %s22, 1
      %s493 = scalar_select %p492, %s22, 1
      %s494 = smul.addr %s493, 8
      %s495 = scalar_lea.vmem %s10, %s494
      %v496 = vld [vmem:[%s457] sm:$0xff]
      %v497 = vrot.slane %v496, 4
      %v498 = vadd.f32 %v496, %v497
      %v499 = vrot.slane %v498, 2
      %v500 = vadd.f32 %v498, %v499
      %v501 = vrot.slane %v500, 1
      %v502 = vadd.f32 %v500, %v501
      %v503 = vrcp.pop 8.0
      %v504 = vmul.f32 %v502, %v503
      %v505 = vsub.f32 %v496, %v504
      %v506 = vmul.f32 %v505, %v505
      %v507 = vrot.slane %v506, 4
      %v508 = vadd.f32 %v506, %v507
      %v509 = vrot.slane %v508, 2
      %v510 = vadd.f32 %v508, %v509
      %v511 = vrot.slane %v510, 1
      %v512 = vadd.f32 %v510, %v511
      %v513 = vmul.f32 %v512, %v503
      %v514 = vadd.f32 %v513, 1e-05
      %v515 = vrsqrt.pop %v514
      %v516 = vmul.f32 %v496, %v515
      %v517 = vsub.f32 0.0, %v504
      %v518 = vmul.f32 %v517, %v515
      %v519 = vadd.f32 %v516, %v518
      %520 = vst [vmem:[%s495] sm:$0xff] %v519
      %v521 = vld [vmem:[%s462] sm:$0xff]
      %v522 = vld [vmem:[%s462 + $0x8] sm:$0xff]
      %v523 = vld [vmem:[%s462 + $0x10] sm:$0xff]
      %v524 = vld [vmem:[%s462 + $0x18] sm:$0xff]
      %v525 = vld [vmem:[%s462 + $0x20] sm:$0xff]
      %v526 = vld [vmem:[%s462 + $0x28] sm:$0xff]
      %v527 = vld [vmem:[%s462 + $0x30] sm:$0xff]
      %v528 = vld [vmem:[%s462 + $0x38] sm:$0xff]
      %v529 = vld [vmem:[%s462 + $0x40] sm:$0xff]
      %v530 = vld [vmem:[%s462 + $0x48] sm:$0xff]
      %v531 = vld [vmem:[%s462 + $0x50] sm:$0xff]
      %v532 = vld [vmem:[%s462 + $0x58] sm:$0xff]
      %v533 = vld [vmem:[%s462 + $0x60] sm:$0xff]
      %v534 = vld [vmem:[%s462 + $0x68] sm:$0xff]
      %v535 = vld [vmem:[%s462 + $0x70] sm:$0xff]
      %v536 = vld [vmem:[%s462 + $0x78] sm:$0xff]
      %537 = vmatprep.subr.mxu0 0.0
      %538 = vmatpush1.msra.mxu0 %v521
      %539 = vmatprep.subr.mxu0 0.0
      %540 = vmatpush1.msra.mxu0 %v522
      %541 = vmatprep.subr.mxu0 0.0
      %542 = vmatpush1.msra.mxu0 %v523
      %543 = vmatprep.subr.mxu0 0.0
      %544 = vmatpush1.msra.mxu0 %v524
      %545 = vmatprep.subr.mxu0 0.0
      %546 = vmatpush1.msra.mxu0 %v525
      %547 = vmatprep.subr.mxu0 0.0
      %548 = vmatpush1.msra.mxu0 %v526
      %549 = vmatprep.subr.mxu0 0.0
      %550 = vmatpush1.msra.mxu0 %v527
      %551 = vmatprep.subr.mxu0 0.0
      %552 = vmatpush1.msra.mxu0 %v528
      %553 = vmatprep.subr.mxu0 0.0
      %554 = vmatpush1.msra.mxu0 %v529
      %555 = vmatprep.subr.mxu0 0.0
      %556 = vmatpush1.msra.mxu0 %v530
      %557 = vmatprep.subr.mxu0 0.0
      %558 = vmatpush1.msra.mxu0 %v531
      %559 = vmatprep.subr.mxu0 0.0
      %560 = vmatpush1.msra.mxu0 %v532
      %561 = vmatprep.subr.mxu0 0.0
      %562 = vmatpush1.msra.mxu0 %v533
      %563 = vmatprep.subr.mxu0 0.0
      %564 = vmatpush1.msra.mxu0 %v534
      %565 = vmatprep.subr.mxu0 0.0
      %566 = vmatpush1.msra.mxu0 %v535
      %567 = vmatprep.subr.mxu0 0.0
      %568 = vmatpush1.msra.mxu0 %v536
      %569 = vmatprep.subr.mxu0 0.0
      %570 = vmatpush1.msra.mxu0 0.0
      %571 = vmatprep.subr.mxu0 0.0
      %572 = vmatpush1.msra.mxu0 0.0
      %573 = vmatprep.subr.mxu0 0.0
      %574 = vmatpush1.msra.mxu0 0.0
      %575 = vmatprep.subr.mxu0 0.0
      %576 = vmatpush1.msra.mxu0 0.0
      %577 = vmatprep.subr.mxu0 0.0
      %578 = vmatpush1.msra.mxu0 0.0
      %579 = vmatprep.subr.mxu0 0.0
      %580 = vmatpush1.msra.mxu0 0.0
      %581 = vmatprep.subr.mxu0 0.0
      %582 = vmatpush1.msra.mxu0 0.0
      %583 = vmatprep.subr.mxu0 0.0
      %584 = vmatpush1.msra.mxu0 0.0
      %585 = vmatprep.subr.mxu0 0.0
      %586 = vmatpush1.msra.mxu0 0.0
      %587 = vmatprep.subr.mxu0 0.0
      %588 = vmatpush1.msra.mxu0 0.0
      %589 = vmatprep.subr.mxu0 0.0
      %590 = vmatpush1.msra.mxu0 0.0
      %591 = vmatprep.subr.mxu0 0.0
      %592 = vmatpush1.msra.mxu0 0.0
      %593 = vmatprep.subr.mxu0 0.0
      %594 = vmatpush1.msra.mxu0 0.0
      %595 = vmatprep.subr.mxu0 0.0
      %596 = vmatpush1.msra.mxu0 0.0
      %597 = vmatprep.subr.mxu0 0.0
      %598 = vmatpush1.msra.mxu0 0.0
      %599 = vmatprep.subr.mxu0 0.0
      %600 = vmatpush1.msra.mxu0 0.0
      %601 = vmatprep.mubr.f32.mxu0 0.0
      %602 = vmatmul.mubr.f32.gmra.mrb[0].mxu0 %v519
      %v603 = vpop.f32.mrb[0].mxu0
      %v604 = vadd.f32 0.0, %v603
      %v605 = vpop.f32.mrb[0].mxu0
      %606 = vdwg.mxu0
      %v607 = vld [vmem:[%s465] sm:$0x1]
      %v608 = vld [vmem:[%s468] sm:$0x1]
      %v609 = vrot.slane %v604, 4
      %v610 = vadd.f32 %v604, %v609
      %v611 = vrot.slane %v610, 2
      %v612 = vadd.f32 %v610, %v611
      %v613 = vrot.slane %v612, 1
      %v614 = vadd.f32 %v612, %v613
      %v615 = vmul.f32 %v614, %v503
      %v616 = vsub.f32 %v604, %v615
      %v617 = vmul.f32 %v616, %v616
      %v618 = vrot.slane %v617, 4
      %v619 = vadd.f32 %v617, %v618
      %v620 = vrot.slane %v619, 2
      %v621 = vadd.f32 %v619, %v620
      %v622 = vrot.slane %v621, 1
      %v623 = vadd.f32 %v621, %v622
      %v624 = vmul.f32 %v623, %v503
      %v625 = vadd.f32 %v624, 1e-05
      %v626 = vrsqrt.pop %v625
      %v627 = vmul.f32 %v607, %v626
      %v628 = vmul.f32 %v615, %v627
      %v629 = vsub.f32 %v608, %v628
      %v631 = vlaneseq
      %v632 = vshrl.u32 %v631, 7
      %v633 = vsub.s32 0, %v632
      %v634 = vrot.slane %v627, %v633
      %v636 = vmul.f32 %v604, %v634
      %v638 = vlaneseq
      %v639 = vshrl.u32 %v638, 7
      %v640 = vsub.s32 0, %v639
      %v641 = vrot.slane %v629, %v640
      %v643 = vadd.f32 %v636, %v641
      %v644 = vmul.f32 %v643, 0.2
      %v645 = vmax.f32 %v643, %v644
      %v646 = vld [vmem:[%s473] sm:$0xff]
      %v647 = vld [vmem:[%s473 + $0x8] sm:$0xff]
      %v648 = vld [vmem:[%s473 + $0x10] sm:$0xff]
      %v649 = vld [vmem:[%s473 + $0x18] sm:$0xff]
      %v650 = vld [vmem:[%s473 + $0x20] sm:$0xff]
      %v651 = vld [vmem:[%s473 + $0x28] sm:$0xff]
      %v652 = vld [vmem:[%s473 + $0x30] sm:$0xff]
      %v653 = vld [vmem:[%s473 + $0x38] sm:$0xff]
      %v654 = vld [vmem:[%s473 + $0x40] sm:$0xff]
      %v655 = vld [vmem:[%s473 + $0x48] sm:$0xff]
      %v656 = vld [vmem:[%s473 + $0x50] sm:$0xff]
      %v657 = vld [vmem:[%s473 + $0x58] sm:$0xff]
      %v658 = vld [vmem:[%s473 + $0x60] sm:$0xff]
      %v659 = vld [vmem:[%s473 + $0x68] sm:$0xff]
      %v660 = vld [vmem:[%s473 + $0x70] sm:$0xff]
      %v661 = vld [vmem:[%s473 + $0x78] sm:$0xff]
      %662 = vmatprep.subr.mxu0 0.0
      %663 = vmatpush1.msra.mxu0 %v646
      %664 = vmatprep.subr.mxu0 0.0
      %665 = vmatpush1.msra.mxu0 %v647
      %666 = vmatprep.subr.mxu0 0.0
      %667 = vmatpush1.msra.mxu0 %v648
      %668 = vmatprep.subr.mxu0 0.0
      %669 = vmatpush1.msra.mxu0 %v649
      %670 = vmatprep.subr.mxu0 0.0
      %671 = vmatpush1.msra.mxu0 %v650
      %672 = vmatprep.subr.mxu0 0.0
      %673 = vmatpush1.msra.mxu0 %v651
      %674 = vmatprep.subr.mxu0 0.0
      %675 = vmatpush1.msra.mxu0 %v652
      %676 = vmatprep.subr.mxu0 0.0
      %677 = vmatpush1.msra.mxu0 %v653
      %678 = vmatprep.subr.mxu0 0.0
      %679 = vmatpush1.msra.mxu0 %v654
      %680 = vmatprep.subr.mxu0 0.0
      %681 = vmatpush1.msra.mxu0 %v655
      %682 = vmatprep.subr.mxu0 0.0
      %683 = vmatpush1.msra.mxu0 %v656
      %684 = vmatprep.subr.mxu0 0.0
      %685 = vmatpush1.msra.mxu0 %v657
      %686 = vmatprep.subr.mxu0 0.0
      %687 = vmatpush1.msra.mxu0 %v658
      %688 = vmatprep.subr.mxu0 0.0
      %689 = vmatpush1.msra.mxu0 %v659
      %690 = vmatprep.subr.mxu0 0.0
      %691 = vmatpush1.msra.mxu0 %v660
      %692 = vmatprep.subr.mxu0 0.0
      %693 = vmatpush1.msra.mxu0 %v661
      %694 = vmatprep.subr.mxu0 0.0
      %695 = vmatpush1.msra.mxu0 0.0
      %696 = vmatprep.subr.mxu0 0.0
      %697 = vmatpush1.msra.mxu0 0.0
      %698 = vmatprep.subr.mxu0 0.0
      %699 = vmatpush1.msra.mxu0 0.0
      %700 = vmatprep.subr.mxu0 0.0
      %701 = vmatpush1.msra.mxu0 0.0
      %702 = vmatprep.subr.mxu0 0.0
      %703 = vmatpush1.msra.mxu0 0.0
      %704 = vmatprep.subr.mxu0 0.0
      %705 = vmatpush1.msra.mxu0 0.0
      %706 = vmatprep.subr.mxu0 0.0
      %707 = vmatpush1.msra.mxu0 0.0
      %708 = vmatprep.subr.mxu0 0.0
      %709 = vmatpush1.msra.mxu0 0.0
      %710 = vmatprep.subr.mxu0 0.0
      %711 = vmatpush1.msra.mxu0 0.0
      %712 = vmatprep.subr.mxu0 0.0
      %713 = vmatpush1.msra.mxu0 0.0
      %714 = vmatprep.subr.mxu0 0.0
      %715 = vmatpush1.msra.mxu0 0.0
      %716 = vmatprep.subr.mxu0 0.0
      %717 = vmatpush1.msra.mxu0 0.0
      %718 = vmatprep.subr.mxu0 0.0
      %719 = vmatpush1.msra.mxu0 0.0
      %720 = vmatprep.subr.mxu0 0.0
      %721 = vmatpush1.msra.mxu0 0.0
      %722 = vmatprep.subr.mxu0 0.0
      %723 = vmatpush1.msra.mxu0 0.0
      %724 = vmatprep.subr.mxu0 0.0
      %725 = vmatpush1.msra.mxu0 0.0
      %726 = vmatprep.mubr.f32.mxu0 0.0
      %727 = vmatmul.mubr.f32.gmra.mrb[0].mxu0 %v645
      %v728 = vpop.f32.mrb[0].mxu0
      %v729 = vadd.f32 0.0, %v728
      %v730 = vpop.f32.mrb[0].mxu0
      %731 = vdwg.mxu0
      %v732 = vld [vmem:[%s476] sm:$0x1]
      %v733 = vld [vmem:[%s479] sm:$0x1]
      %v734 = vrot.slane %v729, 4
      %v735 = vadd.f32 %v729, %v734
      %v736 = vrot.slane %v735, 2
      %v737 = vadd.f32 %v735, %v736
      %v738 = vrot.slane %v737, 1
      %v739 = vadd.f32 %v737, %v738
      %v740 = vmul.f32 %v739, %v503
      %v741 = vsub.f32 %v729, %v740
      %v742 = vmul.f32 %v741, %v741
      %v743 = vrot.slane %v742, 4
      %v744 = vadd.f32 %v742, %v743
      %v745 = vrot.slane %v744, 2
      %v746 = vadd.f32 %v744, %v745
      %v747 = vrot.slane %v746, 1
      %v748 = vadd.f32 %v746, %v747
      %v749 = vmul.f32 %v748, %v503
      %v750 = vadd.f32 %v749, 1e-05
      %v751 = vrsqrt.pop %v750
      %v752 = vmul.f32 %v732, %v751
      %v753 = vmul.f32 %v740, %v752
      %v754 = vsub.f32 %v733, %v753
      %v756 = vlaneseq
      %v757 = vshrl.u32 %v756, 7
      %v758 = vsub.s32 0, %v757
      %v759 = vrot.slane %v752, %v758
      %v761 = vmul.f32 %v729, %v759
      %v763 = vlaneseq
      %v764 = vshrl.u32 %v763, 7
      %v765 = vsub.s32 0, %v764
      %v766 = vrot.slane %v754, %v765
      %v768 = vadd.f32 %v761, %v766
      %v769 = vmul.f32 %v768, 0.2
      %v770 = vmax.f32 %v768, %v769
      %v771 = vld [vmem:[%s484] sm:$0xff]
      %v772 = vld [vmem:[%s484 + $0x8] sm:$0xff]
      %v773 = vld [vmem:[%s484 + $0x10] sm:$0xff]
      %v774 = vld [vmem:[%s484 + $0x18] sm:$0xff]
      %v775 = vld [vmem:[%s484 + $0x20] sm:$0xff]
      %v776 = vld [vmem:[%s484 + $0x28] sm:$0xff]
      %v777 = vld [vmem:[%s484 + $0x30] sm:$0xff]
      %v778 = vld [vmem:[%s484 + $0x38] sm:$0xff]
      %v779 = vld [vmem:[%s484 + $0x40] sm:$0xff]
      %v780 = vld [vmem:[%s484 + $0x48] sm:$0xff]
      %v781 = vld [vmem:[%s484 + $0x50] sm:$0xff]
      %v782 = vld [vmem:[%s484 + $0x58] sm:$0xff]
      %v783 = vld [vmem:[%s484 + $0x60] sm:$0xff]
      %v784 = vld [vmem:[%s484 + $0x68] sm:$0xff]
      %v785 = vld [vmem:[%s484 + $0x70] sm:$0xff]
      %v786 = vld [vmem:[%s484 + $0x78] sm:$0xff]
      %v787 = vld [vmem:[%s487] sm:$0x1]
      %v789 = vlaneseq
      %v790 = vshrl.u32 %v789, 7
      %v791 = vsub.s32 0, %v790
      %v792 = vrot.slane %v787, %v791
      %794 = vmatprep.subr.mxu0 0.0
      %795 = vmatpush1.msra.mxu0 %v771
      %796 = vmatprep.subr.mxu0 0.0
      %797 = vmatpush1.msra.mxu0 %v772
      %798 = vmatprep.subr.mxu0 0.0
      %799 = vmatpush1.msra.mxu0 %v773
      %800 = vmatprep.subr.mxu0 0.0
      %801 = vmatpush1.msra.mxu0 %v774
      %802 = vmatprep.subr.mxu0 0.0
      %803 = vmatpush1.msra.mxu0 %v775
      %804 = vmatprep.subr.mxu0 0.0
      %805 = vmatpush1.msra.mxu0 %v776
      %806 = vmatprep.subr.mxu0 0.0
      %807 = vmatpush1.msra.mxu0 %v777
      %808 = vmatprep.subr.mxu0 0.0
      %809 = vmatpush1.msra.mxu0 %v778
      %810 = vmatprep.subr.mxu0 0.0
      %811 = vmatpush1.msra.mxu0 %v779
      %812 = vmatprep.subr.mxu0 0.0
      %813 = vmatpush1.msra.mxu0 %v780
      %814 = vmatprep.subr.mxu0 0.0
      %815 = vmatpush1.msra.mxu0 %v781
      %816 = vmatprep.subr.mxu0 0.0
      %817 = vmatpush1.msra.mxu0 %v782
      %818 = vmatprep.subr.mxu0 0.0
      %819 = vmatpush1.msra.mxu0 %v783
      %820 = vmatprep.subr.mxu0 0.0
      %821 = vmatpush1.msra.mxu0 %v784
      %822 = vmatprep.subr.mxu0 0.0
      %823 = vmatpush1.msra.mxu0 %v785
      %824 = vmatprep.subr.mxu0 0.0
      %825 = vmatpush1.msra.mxu0 %v786
      %826 = vmatprep.subr.mxu0 0.0
      %827 = vmatpush1.msra.mxu0 0.0
      %828 = vmatprep.subr.mxu0 0.0
      %829 = vmatpush1.msra.mxu0 0.0
      %830 = vmatprep.subr.mxu0 0.0
      %831 = vmatpush1.msra.mxu0 0.0
      %832 = vmatprep.subr.mxu0 0.0
      %833 = vmatpush1.msra.mxu0 0.0
      %834 = vmatprep.subr.mxu0 0.0
      %835 = vmatpush1.msra.mxu0 0.0
      %836 = vmatprep.subr.mxu0 0.0
      %837 = vmatpush1.msra.mxu0 0.0
      %838 = vmatprep.subr.mxu0 0.0
      %839 = vmatpush1.msra.mxu0 0.0
      %840 = vmatprep.subr.mxu0 0.0
      %841 = vmatpush1.msra.mxu0 0.0
      %842 = vmatprep.subr.mxu0 0.0
      %843 = vmatpush1.msra.mxu0 0.0
      %844 = vmatprep.subr.mxu0 0.0
      %845 = vmatpush1.msra.mxu0 0.0
      %846 = vmatprep.subr.mxu0 0.0
      %847 = vmatpush1.msra.mxu0 0.0
      %848 = vmatprep.subr.mxu0 0.0
      %849 = vmatpush1.msra.mxu0 0.0
      %850 = vmatprep.subr.mxu0 0.0
      %851 = vmatpush1.msra.mxu0 0.0
      %852 = vmatprep.subr.mxu0 0.0
      %853 = vmatpush1.msra.mxu0 0.0
      %854 = vmatprep.subr.mxu0 0.0
      %855 = vmatpush1.msra.mxu0 0.0
      %856 = vmatprep.subr.mxu0 0.0
      %857 = vmatpush1.msra.mxu0 0.0
      %858 = vmatprep.mubr.f32.mxu0 0.0
      %859 = vmatmul.mubr.f32.gmra.mrb[0].mxu0 %v770
      %v860 = vpop.f32.mrb[0].mxu0
      %v861 = vadd.f32 %v792, %v860
      %v862 = vpop.f32.mrb[0].mxu0
      %863 = vdwg.mxu0
      %864 = vst [vmem:[%s491] sm:$0xff] %v861
      %p865 = scmp.lt.s32.totalorder %s22, 1
      %s866 = scalar_select %p865, %s22, 1
      %s867 = smul.addr %s866, 8
      %s868 = scalar_lea.vmem %s9, %s867
      %p869 = scmp.lt.s32.totalorder %s22, 1
      %s870 = scalar_select %p869, %s22, 1
      %s871 = smul.addr %s870, 8
      %s872 = scalar_lea.vmem %s10, %s871
      // Predicated region
      $region57: #{bn_common_encoder_forward.1} parent=55 // pred_check
        %p873 = pneg %p274
      $region58: #{bn_common_encoder_forward.1} parent=55 // pred_check_branch
        %875 = sbr.rel (%p873) target = $region60
      $region59: #{bn_common_encoder_forward.1} parent=55 // pred_region
        _
      $region60: #{bn_common_encoder_forward.1} parent=55 // pred_fallthru
        _
      // Predicated region
      $region61: #{bn_common_encoder_forward.1} parent=55 // pred_check
        %p876 = pneg %p300
      $region62: #{bn_common_encoder_forward.1} parent=55 // pred_check_branch
        %878 = sbr.rel (%p876) target = $region64
      $region63: #{bn_common_encoder_forward.1} parent=55 // pred_region
        _
      $region64: #{bn_common_encoder_forward.1} parent=55 // pred_fallthru
        _
    $region56: #{bn_common_encoder_forward.1} parent=5 // pred_fallthru
      _
    %p879 = scmp.le.s32.totalorder 2, %s17
    // Predicated region
    $region65: #{bn_common_encoder_forward.1} parent=5 // pred_check
      %p880 = pneg %p879
    $region66: #{bn_common_encoder_forward.1} parent=5 // pred_check_branch
      %882 = sbr.rel (%p880) target = $region68
    $region67: #{bn_common_encoder_forward.1} parent=5 // pred_region
      %s883 = ssub.s32 %s17, 2
      // Predicated region
      $region69: #{bn_common_encoder_forward.1} parent=67 // pred_check
        %p884 = pneg %p280
      $region70: #{bn_common_encoder_forward.1} parent=67 // pred_check_branch
        %886 = sbr.rel (%p884) target = $region72
      $region71: #{bn_common_encoder_forward.1} parent=67 // pred_region
        %p887 = scmp.lt.s32.totalorder %s23, 1
        %s888 = scalar_select %p887, %s23, 1
        %s889 = smul.addr %s888, 8
        %s890 = scalar_lea.vmem %s9, %s889
      $region72: #{bn_common_encoder_forward.1} parent=67 // pred_fallthru
        _
      // Predicated region
      $region73: #{bn_common_encoder_forward.1} parent=67 // pred_check
        %p891 = pneg %p306
      $region74: #{bn_common_encoder_forward.1} parent=67 // pred_check_branch
        %893 = sbr.rel (%p891) target = $region76
      $region75: #{bn_common_encoder_forward.1} parent=67 // pred_region
        %p894 = scmp.lt.s32.totalorder %s23, 1
        %s895 = scalar_select %p894, %s23, 1
        %s896 = smul.addr %s895, 8
        %s897 = scalar_lea.vmem %s10, %s896
      $region76: #{bn_common_encoder_forward.1} parent=67 // pred_fallthru
        _
    $region68: #{bn_common_encoder_forward.1} parent=5 // pred_fallthru
      _
  $region6: #{bn_common_encoder_forward.1} parent=0 // loop_footer
    %s21 = sadd.s32 1, %s17
  $region7: #{bn_common_encoder_forward.1} parent=0 // loop_footer_branch
    %16 = sbr.rel target = $region3
  $region8: #{bn_common_encoder_forward.1} parent=0 // loop_exit
    _

</llo_original>
